<compile_context>
chip_gen: v7x
topology: tpu7x:2x2x1
jax: 0.10.0
libtpu: 0.0.40
codegen_flags: <defaults>
</compile_context>

<pallas_src>
import jax
import jax.numpy as jnp
from jax.experimental import pallas as pl
from jax.experimental.pallas import tpu as pltpu

LANE = 128
SUBLANE = 8
K_IN = 784    # nn.Linear(784, 10)
N_OUT = 10


def _round_up(x, m):
    return (x + m - 1) // m * m


# --------------------------------------------------------------------------
# Pallas kernel: one M-tile of  y = x @ W_mat + b
# --------------------------------------------------------------------------
def linear_kernel(x_ref, w_ref, b_ref, o_ref):
    # x: (tm, K) bf16, w: (K, Np) bf16, b: (1, Np) f32  ->  o: (tm, Np) f32
    acc = jnp.dot(x_ref[...], w_ref[...], preferred_element_type=jnp.float32)
    o_ref[...] = (acc + b_ref[...]).astype(o_ref.dtype)


# --------------------------------------------------------------------------
# One-time parameter preparation (hoisted out of the hot path)
# --------------------------------------------------------------------------
def prepare_params(w, b):
    """torch nn.Linear layout w:(10,784), b:(10,) -> kernel layout.

    Returns a dict with:
      w_mat: (784, 128) bfloat16, columns 10:128 are zero (lane-dense output)
      b_row: (1, 128)   float32,  columns 10:128 are zero
    """
    n, k = w.shape
    assert (n, k) == (N_OUT, K_IN), (n, k)
    npad = _round_up(n, LANE)
    w_mat = jnp.zeros((k, npad), jnp.bfloat16).at[:, :n].set(
        w.T.astype(jnp.bfloat16))
    b_row = jnp.zeros((1, npad), jnp.float32).at[0, :n].set(
        b.astype(jnp.float32))
    return dict(w_mat=w_mat, b_row=b_row)


# --------------------------------------------------------------------------
# Forward wrapper
# --------------------------------------------------------------------------
def mnist_logistic_forward(xb, prepared):
    """xb: (B, 784).  prepared: output of prepare_params.  Returns (B, 10) f32 logits."""
    w_mat, b_row = prepared["w_mat"], prepared["b_row"]
    k, npad = w_mat.shape
    B = xb.shape[0]

    # Stream activations as bf16 (no-op if caller already provides bf16).
    x = xb.astype(jnp.bfloat16)

    # Portable tile: <=1024 rows; cap so the parallel grid has >=2 steps when
    # possible (engages both TensorCores on v7x; harmless on v5e/v6e).
    tm = min(1024, _round_up(pl.cdiv(B, 2), SUBLANE))
    grid = (pl.cdiv(B, tm),)

    out = pl.pallas_call(
        linear_kernel,
        out_shape=jax.ShapeDtypeStruct((B, npad), jnp.float32),
        grid=grid,
        in_specs=[
            pl.BlockSpec((tm, k), lambda i: (i, 0)),      # activations: tiled over M
            pl.BlockSpec((k, npad), lambda i: (0, 0)),    # weights: VMEM-resident
            pl.BlockSpec((1, npad), lambda i: (0, 0)),    # bias: VMEM-resident
        ],
        out_specs=pl.BlockSpec((tm, npad), lambda i: (i, 0)),
        compiler_params=pltpu.CompilerParams(
            dimension_semantics=("parallel",),
        ),
    )(x, w_mat, b_row)

    # Columns 10:128 are exactly zero; slice back to the module's (B, 10).
    # (Downstream code inside the same jit may prefer to consume the padded
    #  lane-dense logits directly and skip this slice.)
    return out[:, :N_OUT]


# --------------------------------------------------------------------------
# Deterministic parameter init (PyTorch nn.Linear-style uniform(-1/sqrt(fan_in), ·))
# --------------------------------------------------------------------------
def init_linear(key, out_features, in_features):
    kw, kb = jax.random.split(key)
    bound = 1.0 / in_features ** 0.5
    w = jax.random.uniform(kw, (out_features, in_features),
                           minval=-bound, maxval=bound, dtype=jnp.float32)
    b = jax.random.uniform(kb, (out_features,),
                           minval=-bound, maxval=bound, dtype=jnp.float32)
    return w, b


if __name__ == "__main__":
    key = jax.random.PRNGKey(0)
    kx, kp = jax.random.split(key)

    B = 2
    x = jax.random.normal(kx, (B, K_IN), dtype=jnp.float32)

    w, b = init_linear(kp, N_OUT, K_IN)
    prepared = prepare_params(w, b)

    out = mnist_logistic_forward(x, prepared)
    jax.block_until_ready(out)

    assert out.shape == (B, N_OUT), out.shape

    # Reference with the same bf16 input rounding (f32 accumulation).
    x_bf = x.astype(jnp.bfloat16).astype(jnp.float32)
    w_bf = w.astype(jnp.bfloat16).astype(jnp.float32)
    ref_bf = x_bf @ w_bf.T + b
    assert jnp.allclose(out, ref_bf, atol=2e-3, rtol=2e-3), float(
        jnp.max(jnp.abs(out - ref_bf)))

    # Sanity vs full-f32 math (looser: inputs were rounded to bf16 for streaming).
    ref_f32 = x @ w.T + b
    assert jnp.allclose(out, ref_f32, atol=3e-2, rtol=3e-2), float(
        jnp.max(jnp.abs(out - ref_f32)))

    print("KERNEL_OK")
</pallas_src>

<mosaic_0001>
module attributes {stable_mosaic.version = 11 : i64} {
  func.func @linear_kernel(%arg0: i32, %arg1: memref<8x784xbf16, #tpu.memory_space<vmem>>, %arg2: memref<784x128xbf16, #tpu.memory_space<vmem>>, %arg3: memref<1x128xf32, #tpu.memory_space<vmem>>, %arg4: memref<8x128xf32, #tpu.memory_space<vmem>>) attributes {dimension_semantics = [#tpu.dimension_semantics<parallel>], iteration_bounds = array<i64: 1>, scalar_prefetch = 0 : i64, scratch_operands = 0 : i64, tpu.core_type = #tpu.core_type<tc>, window_params = [{transform_indices = @transform_0, window_bounds = array<i64: 8, 784>}, {pipeline_mode = #tpu.pipeline_mode<synchronous>, transform_indices = @transform_1, window_bounds = array<i64: 784, 128>}, {pipeline_mode = #tpu.pipeline_mode<synchronous>, transform_indices = @transform_2, window_bounds = array<i64: 1, 128>}, {transform_indices = @transform_3, window_bounds = array<i64: 8, 128>}]} {
    %c0 = arith.constant 0 : index
    %c0_0 = arith.constant 0 : index
    %0 = vector.load %arg1[%c0, %c0_0] : memref<8x784xbf16, #tpu.memory_space<vmem>>, vector<8x784xbf16>
    %c0_1 = arith.constant 0 : index
    %c0_2 = arith.constant 0 : index
    %1 = vector.load %arg2[%c0_1, %c0_2] : memref<784x128xbf16, #tpu.memory_space<vmem>>, vector<784x128xbf16>
    %cst = arith.constant dense<0.000000e+00> : vector<8x128xf32>
    %2 = tpu.matmul %0, %1, %cst {dimension_numbers = #tpu.dot_dimension_numbers<[1], [0], [0], [1], [0, 0, 1, 1], [], []>} : vector<8x784xbf16>, vector<784x128xbf16>, vector<8x128xf32> -> vector<8x128xf32>
    %c0_3 = arith.constant 0 : index
    %c0_4 = arith.constant 0 : index
    %3 = vector.load %arg3[%c0_3, %c0_4] : memref<1x128xf32, #tpu.memory_space<vmem>>, vector<1x128xf32>
    %4 = vector.broadcast %3 : vector<1x128xf32> to vector<8x128xf32>
    %5 = arith.addf %2, %4 : vector<8x128xf32>
    %c0_5 = arith.constant 0 : index
    %c0_6 = arith.constant 0 : index
    %6 = vector.load %arg4[%c0_5, %c0_6] : memref<8x128xf32, #tpu.memory_space<vmem>>, vector<8x128xf32>
    tpu.vector_store %arg4[%c0_5, %c0_6], %5 {strides = array<i32>} : memref<8x128xf32, #tpu.memory_space<vmem>>, vector<8x128xf32>,
    return
  }
  func.func @transform_0(%arg0: i32) -> (i32, i32) {
    %c0_i32 = arith.constant 0 : i32
    %c0_i32_0 = arith.constant 0 : i32
    return %arg0, %c0_i32 : i32, i32
  }
  func.func @transform_1(%arg0: i32) -> (i32, i32) {
    %c0_i32 = arith.constant 0 : i32
    %c0_i32_0 = arith.constant 0 : i32
    %c0_i32_1 = arith.constant 0 : i32
    return %c0_i32, %c0_i32_0 : i32, i32
  }
  func.func @transform_2(%arg0: i32) -> (i32, i32) {
    %c0_i32 = arith.constant 0 : i32
    %c0_i32_0 = arith.constant 0 : i32
    %c0_i32_1 = arith.constant 0 : i32
    return %c0_i32, %c0_i32_0 : i32, i32
  }
  func.func @transform_3(%arg0: i32) -> (i32, i32) {
    %c0_i32 = arith.constant 0 : i32
    %c0_i32_0 = arith.constant 0 : i32
    return %arg0, %c0_i32 : i32, i32
  }
}

</mosaic_0001>

<llo_original>
// kernel: tpu_custom_call.1
$region0: #{tpu_custom_call.1}
  #allocation0 [shape = 'u32[]', space=smem, size = 0x4, offset = 0x4, fixed_abs, tag = 'smem constant byte address 0x4 - core index']
  #allocation1 [shape = 'u32[144,128]{1,0:T(1,128)}', space=vmem, size = 0x12000, scoped, tag = 'internal scratch']
  %s0 = inlined_call_operand.hbm [shape: bf16[2,784], index: 0, kind: input, shape index: {}]
  %s1 = inlined_call_operand.hbm [shape: bf16[784,128], index: 1, kind: input, shape index: {}]
  %s2 = inlined_call_operand.vmem [shape: f32[1,128], index: 2, kind: input, shape index: {}]
  %s3 = inlined_call_operand.hbm [shape: f32[2,128], index: 3, kind: output, shape index: {}]
  %s4 = sld [smem:[#allocation0]]
  $region30: #{tpu_custom_call.1} parent=0
    _
  %s6 = ssub.s32 1, %s4
  %s7 = scalar_select 0, %s6, %s4
  $region1: #{tpu_custom_call.1} parent=0
    #allocation2 [shape = 'u8[14336]{0}', space=vmem, size = 0x3800, scoped, tag = 'input window, operand 0, single buffered']
    #allocation3 [shape = 's32[1]{0}', space=sflag, size = 0x4, scoped, tag = 'scoped memory for tpu_custom_call.1']
    #allocation4 [shape = 's32[1]{0}', space=sflag, size = 0x4, scoped, tag = 'scoped memory for tpu_custom_call.1']
    #allocation5 [shape = 'u8[200704]{0}', space=vmem, size = 0x31000, scoped, tag = 'input window, operand 1, single buffered']
    #allocation6 [shape = 's32[1]{0}', space=sflag, size = 0x4, scoped, tag = 'scoped memory for tpu_custom_call.1']
    #allocation7 [shape = 'u8[4096]{0}', space=vmem, size = 0x1000, scoped, tag = 'output window, operand 0, single buffered']
    %8 = vsyncpa [#allocation3], 0
    %9 = vsyncpa [#allocation6], 0
    %10 = vsyncpa [#allocation4], 0
    // Predicated region
    $region2: #{tpu_custom_call.1} parent=1 // pred_check
      _
    $region3: #{tpu_custom_call.1} parent=1 // pred_check_branch
      %12 = sbr.rel (0) target = $region5
    $region4: #{tpu_custom_call.1} parent=1 // pred_region
      %s14 = ssub.s32 448, 112
      %15 = vsyncadd [#allocation3], %s14
      %s16 = sshll.u32 [#allocation2], 4
      %s17 = int_to_ptr.vmem [resolvable:$true] %s16
      %22 = dma.hbm_to_vmem [thread:$0]  %s0, 112, %s17, [#allocation3], 112, 112, 7
    $region5: #{tpu_custom_call.1} parent=1 // pred_fallthru
      _
    // Predicated region
    $region6: #{tpu_custom_call.1} parent=1 // pred_check
      _
    $region7: #{tpu_custom_call.1} parent=1 // pred_check_branch
      %24 = sbr.rel (0) target = $region9
    $region8: #{tpu_custom_call.1} parent=1 // pred_region
      %s26 = ssub.s32 6272, 6272
      %27 = vsyncadd [#allocation6], %s26
      %s28 = sshll.u32 [#allocation5], 4
      %s29 = int_to_ptr.vmem [resolvable:$true] %s28
      %34 = dma.hbm_to_vmem [thread:$0]  %s1, 6272, %s29, [#allocation6], 64, 64, 4
    $region9: #{tpu_custom_call.1} parent=1 // pred_fallthru
      _
    // Predicated region
    $region10: #{tpu_custom_call.1} parent=1 // pred_check
      _
    $region11: #{tpu_custom_call.1} parent=1 // pred_check_branch
      %36 = sbr.rel (0) target = $region13
    $region12: #{tpu_custom_call.1} parent=1 // pred_region
      _
    $region13: #{tpu_custom_call.1} parent=1 // pred_fallthru
      _
    // Predicated region
    $region14: #{tpu_custom_call.1} parent=1 // pred_check
      _
    $region15: #{tpu_custom_call.1} parent=1 // pred_check_branch
      %38 = sbr.rel (0) target = $region17
    $region16: #{tpu_custom_call.1} parent=1 // pred_region
      %39 = dma.done [#allocation3], 448
    $region17: #{tpu_custom_call.1} parent=1 // pred_fallthru
      _
    // Predicated region
    $region18: #{tpu_custom_call.1} parent=1 // pred_check
      _
    $region19: #{tpu_custom_call.1} parent=1 // pred_check_branch
      %41 = sbr.rel (0) target = $region21
    $region20: #{tpu_custom_call.1} parent=1 // pred_region
      %42 = dma.done [#allocation6], 6272
    $region21: #{tpu_custom_call.1} parent=1 // pred_fallthru
      _
    %v44 = vld [vmem:[#allocation2] sm:$0x7f]
    %v45 = vld [vmem:[#allocation2 + $0x7] sm:$0x7f]
    %v46 = vld [vmem:[#allocation2 + $0xe] sm:$0x7f]
    %v47 = vld [vmem:[#allocation2 + $0x15] sm:$0x7f]
    %v48 = vld [vmem:[#allocation5] sm:$0xf]
    %v49 = vld [vmem:[#allocation5 + $0x4] sm:$0xf]
    %v50 = vld [vmem:[#allocation5 + $0x8] sm:$0xf]
    %v51 = vld [vmem:[#allocation5 + $0xc] sm:$0xf]
    %v52 = vld [vmem:[#allocation5 + $0x10] sm:$0xf]
    %v53 = vld [vmem:[#allocation5 + $0x14] sm:$0xf]
    %v54 = vld [vmem:[#allocation5 + $0x18] sm:$0xf]
    %v55 = vld [vmem:[#allocation5 + $0x1c] sm:$0xf]
    %v56 = vld [vmem:[#allocation5 + $0x20] sm:$0xf]
    %v57 = vld [vmem:[#allocation5 + $0x24] sm:$0xf]
    %v58 = vld [vmem:[#allocation5 + $0x28] sm:$0xf]
    %v59 = vld [vmem:[#allocation5 + $0x2c] sm:$0xf]
    %v60 = vld [vmem:[#allocation5 + $0x30] sm:$0xf]
    %v61 = vld [vmem:[#allocation5 + $0x34] sm:$0xf]
    %v62 = vld [vmem:[#allocation5 + $0x38] sm:$0xf]
    %v63 = vld [vmem:[#allocation5 + $0x3c] sm:$0xf]
    %v64 = vld [vmem:[#allocation5 + $0x40] sm:$0xf]
    %v65 = vld [vmem:[#allocation5 + $0x44] sm:$0xf]
    %v66 = vld [vmem:[#allocation5 + $0x48] sm:$0xf]
    %v67 = vld [vmem:[#allocation5 + $0x4c] sm:$0xf]
    %v68 = vld [vmem:[#allocation5 + $0x50] sm:$0xf]
    %v69 = vld [vmem:[#allocation5 + $0x54] sm:$0xf]
    %v70 = vld [vmem:[#allocation5 + $0x58] sm:$0xf]
    %v71 = vld [vmem:[#allocation5 + $0x5c] sm:$0xf]
    %v72 = vld [vmem:[#allocation5 + $0x60] sm:$0xf]
    %v73 = vld [vmem:[#allocation5 + $0x64] sm:$0xf]
    %v74 = vld [vmem:[#allocation5 + $0x68] sm:$0xf]
    %v75 = vld [vmem:[#allocation5 + $0x6c] sm:$0xf]
    %v76 = vld [vmem:[#allocation5 + $0x70] sm:$0xf]
    %v77 = vld [vmem:[#allocation5 + $0x74] sm:$0xf]
    %v78 = vld [vmem:[#allocation5 + $0x78] sm:$0xf]
    %v79 = vld [vmem:[#allocation5 + $0x7c] sm:$0xf]
    %v80 = vld [vmem:[#allocation5 + $0x80] sm:$0xf]
    %v81 = vld [vmem:[#allocation5 + $0x84] sm:$0xf]
    %v82 = vld [vmem:[#allocation5 + $0x88] sm:$0xf]
    %v83 = vld [vmem:[#allocation5 + $0x8c] sm:$0xf]
    %v84 = vld [vmem:[#allocation5 + $0x90] sm:$0xf]
    %v85 = vld [vmem:[#allocation5 + $0x94] sm:$0xf]
    %v86 = vld [vmem:[#allocation5 + $0x98] sm:$0xf]
    %v87 = vld [vmem:[#allocation5 + $0x9c] sm:$0xf]
    %v88 = vld [vmem:[#allocation5 + $0xa0] sm:$0xf]
    %v89 = vld [vmem:[#allocation5 + $0xa4] sm:$0xf]
    %v90 = vld [vmem:[#allocation5 + $0xa8] sm:$0xf]
    %v91 = vld [vmem:[#allocation5 + $0xac] sm:$0xf]
    %v92 = vld [vmem:[#allocation5 + $0xb0] sm:$0xf]
    %v93 = vld [vmem:[#allocation5 + $0xb4] sm:$0xf]
    %v94 = vld [vmem:[#allocation5 + $0xb8] sm:$0xf]
    %v95 = vld [vmem:[#allocation5 + $0xbc] sm:$0xf]
    %v96 = vld [vmem:[#allocation5 + $0xc0] sm:$0xf]
    %v97 = vld [vmem:[#allocation5 + $0xc4] sm:$0xf]
    %v98 = vld [vmem:[#allocation5 + $0xc8] sm:$0xf]
    %v99 = vld [vmem:[#allocation5 + $0xcc] sm:$0xf]
    %v100 = vld [vmem:[#allocation5 + $0xd0] sm:$0xf]
    %v101 = vld [vmem:[#allocation5 + $0xd4] sm:$0xf]
    %v102 = vld [vmem:[#allocation5 + $0xd8] sm:$0xf]
    %v103 = vld [vmem:[#allocation5 + $0xdc] sm:$0xf]
    %v104 = vld [vmem:[#allocation5 + $0xe0] sm:$0xf]
    %v105 = vld [vmem:[#allocation5 + $0xe4] sm:$0xf]
    %v106 = vld [vmem:[#allocation5 + $0xe8] sm:$0xf]
    %v107 = vld [vmem:[#allocation5 + $0xec] sm:$0xf]
    %v108 = vld [vmem:[#allocation5 + $0xf0] sm:$0xf]
    %v109 = vld [vmem:[#allocation5 + $0xf4] sm:$0xf]
    %v110 = vld [vmem:[#allocation5 + $0xf8] sm:$0xf]
    %v111 = vld [vmem:[#allocation5 + $0xfc] sm:$0xf]
    %v112 = vld [vmem:[#allocation5 + $0x100] sm:$0xf]
    %v113 = vld [vmem:[#allocation5 + $0x104] sm:$0xf]
    %v114 = vld [vmem:[#allocation5 + $0x108] sm:$0xf]
    %v115 = vld [vmem:[#allocation5 + $0x10c] sm:$0xf]
    %v116 = vld [vmem:[#allocation5 + $0x110] sm:$0xf]
    %v117 = vld [vmem:[#allocation5 + $0x114] sm:$0xf]
    %v118 = vld [vmem:[#allocation5 + $0x118] sm:$0xf]
    %v119 = vld [vmem:[#allocation5 + $0x11c] sm:$0xf]
    %v120 = vld [vmem:[#allocation5 + $0x120] sm:$0xf]
    %v121 = vld [vmem:[#allocation5 + $0x124] sm:$0xf]
    %v122 = vld [vmem:[#allocation5 + $0x128] sm:$0xf]
    %v123 = vld [vmem:[#allocation5 + $0x12c] sm:$0xf]
    %v124 = vld [vmem:[#allocation5 + $0x130] sm:$0xf]
    %v125 = vld [vmem:[#allocation5 + $0x134] sm:$0xf]
    %v126 = vld [vmem:[#allocation5 + $0x138] sm:$0xf]
    %v127 = vld [vmem:[#allocation5 + $0x13c] sm:$0xf]
    %v128 = vld [vmem:[#allocation5 + $0x140] sm:$0xf]
    %v129 = vld [vmem:[#allocation5 + $0x144] sm:$0xf]
    %v130 = vld [vmem:[#allocation5 + $0x148] sm:$0xf]
    %v131 = vld [vmem:[#allocation5 + $0x14c] sm:$0xf]
    %v132 = vld [vmem:[#allocation5 + $0x150] sm:$0xf]
    %v133 = vld [vmem:[#allocation5 + $0x154] sm:$0xf]
    %v134 = vld [vmem:[#allocation5 + $0x158] sm:$0xf]
    %v135 = vld [vmem:[#allocation5 + $0x15c] sm:$0xf]
    %v136 = vld [vmem:[#allocation5 + $0x160] sm:$0xf]
    %v137 = vld [vmem:[#allocation5 + $0x164] sm:$0xf]
    %v138 = vld [vmem:[#allocation5 + $0x168] sm:$0xf]
    %v139 = vld [vmem:[#allocation5 + $0x16c] sm:$0xf]
    %v140 = vld [vmem:[#allocation5 + $0x170] sm:$0xf]
    %v141 = vld [vmem:[#allocation5 + $0x174] sm:$0xf]
    %v142 = vld [vmem:[#allocation5 + $0x178] sm:$0xf]
    %v143 = vld [vmem:[#allocation5 + $0x17c] sm:$0xf]
    %v144 = vld [vmem:[#allocation5 + $0x180] sm:$0xf]
    %v145 = vld [vmem:[#allocation5 + $0x184] sm:$0xf]
    %v146 = vld [vmem:[%s2] sm:$0x1]
    %v148 = vlaneseq
    %v149 = vshrl.u32 %v148, 7
    %v150 = vsub.s32 0, %v149
    %v151 = vrot.slane %v146, %v150
    %v157 = vcombine.low %v44, %v45
    %v158 = vcombine.high %v44, %v45
    %v159 = vcombine.low %v46, %v47
    %v160 = vcombine.high %v46, %v47
    %v162 = vunpack.c.l.s4 1966171168
    %v163 = vunpack.c.0.s8 %v162
    %v164 = vlaneseq
    %v165 = vshrl.u32 %v164, 7
    %v166 = vsub.s32 %v163, %v165
    %v167 = vrot.slane %v157, %v166
    %v169 = vunpack.c.l.s4 1966171168
    %v170 = vunpack.c.0.s8 %v169
    %v171 = vlaneseq
    %v172 = vshrl.u32 %v171, 7
    %v173 = vsub.s32 %v170, %v172
    %v174 = vrot.slane %v158, %v173
    %v176 = vunpack.c.l.s4 1966171168
    %v177 = vunpack.c.0.s8 %v176
    %v178 = vlaneseq
    %v179 = vshrl.u32 %v178, 7
    %v180 = vsub.s32 %v177, %v179
    %v181 = vrot.slane %v159, %v180
    %v183 = vunpack.c.l.s4 1966171168
    %v184 = vunpack.c.0.s8 %v183
    %v185 = vlaneseq
    %v186 = vshrl.u32 %v185, 7
    %v187 = vsub.s32 %v184, %v186
    %v188 = vrot.slane %v160, %v187
    %v189 = vcombine.low %v167, %v181
    %v190 = vcombine.high %v167, %v181
    %v191 = vcombine.low %v174, %v188
    %v192 = vcombine.high %v174, %v188
    %v194 = vunpack.c.l.s4 1966171168
    %v195 = vunpack.c.0.s8 %v194
    %v196 = vlaneseq
    %v197 = vshrl.u32 %v196, 7
    %v198 = vsub.s32 %v195, %v197
    %v199 = vrot.slane %v189, %v198
    %v201 = vunpack.c.l.s4 1966171168
    %v202 = vunpack.c.0.s8 %v201
    %v203 = vlaneseq
    %v204 = vshrl.u32 %v203, 7
    %v205 = vsub.s32 %v202, %v204
    %v206 = vrot.slane %v191, %v205
    %v208 = vunpack.c.l.s4 1966171168
    %v209 = vunpack.c.0.s8 %v208
    %v210 = vlaneseq
    %v211 = vshrl.u32 %v210, 7
    %v212 = vsub.s32 %v209, %v211
    %v213 = vrot.slane %v190, %v212
    %v215 = vunpack.c.l.s4 1966171168
    %v216 = vunpack.c.0.s8 %v215
    %v217 = vlaneseq
    %v218 = vshrl.u32 %v217, 7
    %v219 = vsub.s32 %v216, %v218
    %v220 = vrot.slane %v192, %v219
    %v221 = vcombine.high %v199, %v199
    %v222 = vcombine.high %v206, %v206
    %v223 = vcombine.high %v213, %v213
    %v328 = vunpack.c.l.b16 %v48
    %v329 = vunpack.c.l.b16 %v49
    %v330 = vunpack.c.l.b16 %v50
    %v331 = vunpack.c.l.b16 %v51
    %v332 = vunpack.c.l.b16 %v52
    %v333 = vunpack.c.l.b16 %v53
    %v334 = vunpack.c.l.b16 %v54
    %v335 = vunpack.c.l.b16 %v55
    %v336 = vunpack.c.l.b16 %v56
    %v337 = vunpack.c.l.b16 %v57
    %v338 = vunpack.c.l.b16 %v58
    %v339 = vunpack.c.l.b16 %v59
    %v340 = vunpack.c.l.b16 %v60
    %v341 = vunpack.c.l.b16 %v61
    %v342 = vunpack.c.l.b16 %v62
    %v343 = vunpack.c.l.b16 %v63
    %v344 = vunpack.c.l.b16 %v64
    %v345 = vunpack.c.l.b16 %v65
    %v346 = vunpack.c.l.b16 %v66
    %v347 = vunpack.c.l.b16 %v67
    %v348 = vunpack.c.l.b16 %v68
    %v349 = vunpack.c.l.b16 %v69
    %v350 = vunpack.c.l.b16 %v70
    %v351 = vunpack.c.l.b16 %v71
    %v352 = vunpack.c.l.b16 %v72
    %v353 = vunpack.c.l.b16 %v73
    %v354 = vunpack.c.l.b16 %v74
    %v355 = vunpack.c.l.b16 %v75
    %v356 = vunpack.c.l.b16 %v76
    %v357 = vunpack.c.l.b16 %v77
    %v358 = vunpack.c.l.b16 %v78
    %v359 = vunpack.c.l.b16 %v79
    %v360 = vunpack.c.l.b16 %v80
    %v361 = vunpack.c.l.b16 %v81
    %v362 = vunpack.c.l.b16 %v82
    %v363 = vunpack.c.l.b16 %v83
    %v364 = vunpack.c.l.b16 %v84
    %v365 = vunpack.c.l.b16 %v85
    %v366 = vunpack.c.l.b16 %v86
    %v367 = vunpack.c.l.b16 %v87
    %v368 = vunpack.c.l.b16 %v88
    %v369 = vunpack.c.l.b16 %v89
    %v370 = vunpack.c.l.b16 %v90
    %v371 = vunpack.c.l.b16 %v91
    %v372 = vunpack.c.l.b16 %v92
    %v373 = vunpack.c.l.b16 %v93
    %v374 = vunpack.c.l.b16 %v94
    %v375 = vunpack.c.l.b16 %v95
    %v376 = vunpack.c.l.b16 %v96
    %v377 = vunpack.c.l.b16 %v97
    %v378 = vunpack.c.l.b16 %v98
    %v379 = vunpack.c.l.b16 %v99
    %v380 = vunpack.c.l.b16 %v100
    %v381 = vunpack.c.l.b16 %v101
    %v382 = vunpack.c.l.b16 %v102
    %v383 = vunpack.c.l.b16 %v103
    %v384 = vunpack.c.l.b16 %v104
    %v385 = vunpack.c.l.b16 %v105
    %v386 = vunpack.c.l.b16 %v106
    %v387 = vunpack.c.l.b16 %v107
    %v388 = vunpack.c.l.b16 %v108
    %v389 = vunpack.c.l.b16 %v109
    %v390 = vunpack.c.l.b16 %v110
    %v391 = vunpack.c.l.b16 %v111
    %v392 = vunpack.c.l.b16 %v112
    %v393 = vunpack.c.l.b16 %v113
    %v394 = vunpack.c.l.b16 %v114
    %v395 = vunpack.c.l.b16 %v115
    %v396 = vunpack.c.l.b16 %v116
    %v397 = vunpack.c.l.b16 %v117
    %v398 = vunpack.c.l.b16 %v118
    %v399 = vunpack.c.l.b16 %v119
    %v400 = vunpack.c.l.b16 %v120
    %v401 = vunpack.c.l.b16 %v121
    %v402 = vunpack.c.l.b16 %v122
    %v403 = vunpack.c.l.b16 %v123
    %v404 = vunpack.c.l.b16 %v124
    %v405 = vunpack.c.l.b16 %v125
    %v406 = vunpack.c.l.b16 %v126
    %v407 = vunpack.c.l.b16 %v127
    %v408 = vunpack.c.l.b16 %v128
    %v409 = vunpack.c.l.b16 %v129
    %v410 = vunpack.c.l.b16 %v130
    %v411 = vunpack.c.l.b16 %v131
    %v412 = vunpack.c.l.b16 %v132
    %v413 = vunpack.c.l.b16 %v133
    %v414 = vunpack.c.l.b16 %v134
    %v415 = vunpack.c.l.b16 %v135
    %v416 = vunpack.c.l.b16 %v136
    %v417 = vunpack.c.l.b16 %v137
    %v418 = vunpack.c.l.b16 %v138
    %v419 = vunpack.c.l.b16 %v139
    %v420 = vunpack.c.l.b16 %v140
    %v421 = vunpack.c.l.b16 %v141
    %v422 = vunpack.c.l.b16 %v142
    %v423 = vunpack.c.l.b16 %v143
    %v424 = vunpack.c.l.b16 %v144
    %v425 = vunpack.c.l.b16 %v145
    %v426 = vpack.c.b16 %v329, %v328
    %v427 = vpack.c.b16 %v331, %v330
    %v428 = vpack.c.b16 %v333, %v332
    %v429 = vpack.c.b16 %v335, %v334
    %v430 = vpack.c.b16 %v337, %v336
    %v431 = vpack.c.b16 %v339, %v338
    %v432 = vpack.c.b16 %v341, %v340
    %v433 = vpack.c.b16 %v343, %v342
    %v434 = vpack.c.b16 %v345, %v344
    %v435 = vpack.c.b16 %v347, %v346
    %v436 = vpack.c.b16 %v349, %v348
    %v437 = vpack.c.b16 %v351, %v350
    %v438 = vpack.c.b16 %v353, %v352
    %v439 = vpack.c.b16 %v355, %v354
    %v440 = vpack.c.b16 %v357, %v356
    %v441 = vpack.c.b16 %v359, %v358
    %v442 = vpack.c.b16 %v361, %v360
    %v443 = vpack.c.b16 %v363, %v362
    %v444 = vpack.c.b16 %v365, %v364
    %v445 = vpack.c.b16 %v367, %v366
    %v446 = vpack.c.b16 %v369, %v368
    %v447 = vpack.c.b16 %v371, %v370
    %v448 = vpack.c.b16 %v373, %v372
    %v449 = vpack.c.b16 %v375, %v374
    %v450 = vpack.c.b16 %v377, %v376
    %v451 = vpack.c.b16 %v379, %v378
    %v452 = vpack.c.b16 %v381, %v380
    %v453 = vpack.c.b16 %v383, %v382
    %v454 = vpack.c.b16 %v385, %v384
    %v455 = vpack.c.b16 %v387, %v386
    %v456 = vpack.c.b16 %v389, %v388
    %v457 = vpack.c.b16 %v391, %v390
    %v458 = vpack.c.b16 %v393, %v392
    %v459 = vpack.c.b16 %v395, %v394
    %v460 = vpack.c.b16 %v397, %v396
    %v461 = vpack.c.b16 %v399, %v398
    %v462 = vpack.c.b16 %v401, %v400
    %v463 = vpack.c.b16 %v403, %v402
    %v464 = vpack.c.b16 %v405, %v404
    %v465 = vpack.c.b16 %v407, %v406
    %v466 = vpack.c.b16 %v409, %v408
    %v467 = vpack.c.b16 %v411, %v410
    %v468 = vpack.c.b16 %v413, %v412
    %v469 = vpack.c.b16 %v415, %v414
    %v470 = vpack.c.b16 %v417, %v416
    %v471 = vpack.c.b16 %v419, %v418
    %v472 = vpack.c.b16 %v421, %v420
    %v473 = vpack.c.b16 %v423, %v422
    %v474 = vpack.c.b16 %v425, %v424
    %vm524 = vcmask 130048
    %v526 = vsel %vm524, %v222, 0
    %528 = vmatprep.subr.bf16.mxu0 0
    %529 = vmatpush1.bf16.msra.mxu0 %v426
    %530 = vmatprep.subr.bf16.mxu0 0
    %531 = vmatpush1.bf16.msra.mxu0 %v427
    %532 = vmatprep.subr.bf16.mxu0 0
    %533 = vmatpush1.bf16.msra.mxu0 %v428
    %534 = vmatprep.subr.bf16.mxu0 0
    %535 = vmatpush1.bf16.msra.mxu0 %v429
    %536 = vmatprep.subr.bf16.mxu0 0
    %537 = vmatpush1.bf16.msra.mxu0 %v430
    %538 = vmatprep.subr.bf16.mxu0 0
    %539 = vmatpush1.bf16.msra.mxu0 %v431
    %540 = vmatprep.subr.bf16.mxu0 0
    %541 = vmatpush1.bf16.msra.mxu0 %v432
    %542 = vmatprep.subr.bf16.mxu0 0
    %543 = vmatpush1.bf16.msra.mxu0 %v433
    %544 = vmatprep.subr.bf16.mxu0 0
    %545 = vmatpush1.bf16.msra.mxu0 %v434
    %546 = vmatprep.subr.bf16.mxu0 0
    %547 = vmatpush1.bf16.msra.mxu0 %v435
    %548 = vmatprep.subr.bf16.mxu0 0
    %549 = vmatpush1.bf16.msra.mxu0 %v436
    %550 = vmatprep.subr.bf16.mxu0 0
    %551 = vmatpush1.bf16.msra.mxu0 %v437
    %552 = vmatprep.subr.bf16.mxu0 0
    %553 = vmatpush1.bf16.msra.mxu0 %v438
    %554 = vmatprep.subr.bf16.mxu0 0
    %555 = vmatpush1.bf16.msra.mxu0 %v439
    %556 = vmatprep.subr.bf16.mxu0 0
    %557 = vmatpush1.bf16.msra.mxu0 %v440
    %558 = vmatprep.subr.bf16.mxu0 0
    %559 = vmatpush1.bf16.msra.mxu0 %v441
    %560 = vmatprep.mubr.bf16.mxu0 %v213
    %561 = vmatmul.mubr.bf16.gmra.mrb[0].mxu0 %v199
    %v562 = vpop.f32.mrb[0].mxu0
    %v563 = vadd.f32 %v151, %v562
    %v564 = vpop.f32.mrb[0].mxu0
    %v565 = vpop.f32.mrb[0].mxu0
    %v566 = vpop.f32.mrb[0].mxu0
    %567 = vdwg.mxu0
    %568 = vmatprep.subr.bf16.mxu0 0
    %569 = vmatpush1.bf16.msra.mxu0 %v442
    %570 = vmatprep.subr.bf16.mxu0 0
    %571 = vmatpush1.bf16.msra.mxu0 %v443
    %572 = vmatprep.subr.bf16.mxu0 0
    %573 = vmatpush1.bf16.msra.mxu0 %v444
    %574 = vmatprep.subr.bf16.mxu0 0
    %575 = vmatpush1.bf16.msra.mxu0 %v445
    %576 = vmatprep.subr.bf16.mxu0 0
    %577 = vmatpush1.bf16.msra.mxu0 %v446
    %578 = vmatprep.subr.bf16.mxu0 0
    %579 = vmatpush1.bf16.msra.mxu0 %v447
    %580 = vmatprep.subr.bf16.mxu0 0
    %581 = vmatpush1.bf16.msra.mxu0 %v448
    %582 = vmatprep.subr.bf16.mxu0 0
    %583 = vmatpush1.bf16.msra.mxu0 %v449
    %584 = vmatprep.subr.bf16.mxu0 0
    %585 = vmatpush1.bf16.msra.mxu0 %v450
    %586 = vmatprep.subr.bf16.mxu0 0
    %587 = vmatpush1.bf16.msra.mxu0 %v451
    %588 = vmatprep.subr.bf16.mxu0 0
    %589 = vmatpush1.bf16.msra.mxu0 %v452
    %590 = vmatprep.subr.bf16.mxu0 0
    %591 = vmatpush1.bf16.msra.mxu0 %v453
    %592 = vmatprep.subr.bf16.mxu0 0
    %593 = vmatpush1.bf16.msra.mxu0 %v454
    %594 = vmatprep.subr.bf16.mxu0 0
    %595 = vmatpush1.bf16.msra.mxu0 %v455
    %596 = vmatprep.subr.bf16.mxu0 0
    %597 = vmatpush1.bf16.msra.mxu0 %v456
    %598 = vmatprep.subr.bf16.mxu0 0
    %599 = vmatpush1.bf16.msra.mxu0 %v457
    %600 = vmatprep.mubr.bf16.mxu0 %v223
    %601 = vmatmul.mubr.bf16.gmra.mrb[0].mxu0 %v221
    %v602 = vpop.f32.mrb[0].mxu0
    %v603 = vadd.f32 %v563, %v602
    %v604 = vpop.f32.mrb[0].mxu0
    %v605 = vpop.f32.mrb[0].mxu0
    %v606 = vpop.f32.mrb[0].mxu0
    %607 = vdwg.mxu0
    %608 = vmatprep.subr.bf16.mxu0 0
    %609 = vmatpush1.bf16.msra.mxu0 %v458
    %610 = vmatprep.subr.bf16.mxu0 0
    %611 = vmatpush1.bf16.msra.mxu0 %v459
    %612 = vmatprep.subr.bf16.mxu0 0
    %613 = vmatpush1.bf16.msra.mxu0 %v460
    %614 = vmatprep.subr.bf16.mxu0 0
    %615 = vmatpush1.bf16.msra.mxu0 %v461
    %616 = vmatprep.subr.bf16.mxu0 0
    %617 = vmatpush1.bf16.msra.mxu0 %v462
    %618 = vmatprep.subr.bf16.mxu0 0
    %619 = vmatpush1.bf16.msra.mxu0 %v463
    %620 = vmatprep.subr.bf16.mxu0 0
    %621 = vmatpush1.bf16.msra.mxu0 %v464
    %622 = vmatprep.subr.bf16.mxu0 0
    %623 = vmatpush1.bf16.msra.mxu0 %v465
    %624 = vmatprep.subr.bf16.mxu0 0
    %625 = vmatpush1.bf16.msra.mxu0 %v466
    %626 = vmatprep.subr.bf16.mxu0 0
    %627 = vmatpush1.bf16.msra.mxu0 %v467
    %628 = vmatprep.subr.bf16.mxu0 0
    %629 = vmatpush1.bf16.msra.mxu0 %v468
    %630 = vmatprep.subr.bf16.mxu0 0
    %631 = vmatpush1.bf16.msra.mxu0 %v469
    %632 = vmatprep.subr.bf16.mxu0 0
    %633 = vmatpush1.bf16.msra.mxu0 %v470
    %634 = vmatprep.subr.bf16.mxu0 0
    %635 = vmatpush1.bf16.msra.mxu0 %v471
    %636 = vmatprep.subr.bf16.mxu0 0
    %637 = vmatpush1.bf16.msra.mxu0 %v472
    %638 = vmatprep.subr.bf16.mxu0 0
    %639 = vmatpush1.bf16.msra.mxu0 %v473
    %640 = vmatprep.mubr.bf16.mxu0 %v220
    %641 = vmatmul.mubr.bf16.gmra.mrb[0].mxu0 %v206
    %v642 = vpop.f32.mrb[0].mxu0
    %v643 = vadd.f32 %v603, %v642
    %v644 = vpop.f32.mrb[0].mxu0
    %v645 = vpop.f32.mrb[0].mxu0
    %v646 = vpop.f32.mrb[0].mxu0
    %647 = vdwg.mxu0
    %648 = vmatprep.subr.bf16.mxu0 0
    %649 = vmatpush1.bf16.msra.mxu0 %v474
    %650 = vmatprep.subr.bf16.mxu0 0
    %651 = vmatpush1.bf16.msra.mxu0 0
    %652 = vmatprep.subr.bf16.mxu0 0
    %653 = vmatpush1.bf16.msra.mxu0 0
    %654 = vmatprep.subr.bf16.mxu0 0
    %655 = vmatpush1.bf16.msra.mxu0 0
    %656 = vmatprep.subr.bf16.mxu0 0
    %657 = vmatpush1.bf16.msra.mxu0 0
    %658 = vmatprep.subr.bf16.mxu0 0
    %659 = vmatpush1.bf16.msra.mxu0 0
    %660 = vmatprep.subr.bf16.mxu0 0
    %661 = vmatpush1.bf16.msra.mxu0 0
    %662 = vmatprep.subr.bf16.mxu0 0
    %663 = vmatpush1.bf16.msra.mxu0 0
    %664 = vmatprep.subr.bf16.mxu0 0
    %665 = vmatpush1.bf16.msra.mxu0 0
    %666 = vmatprep.subr.bf16.mxu0 0
    %667 = vmatpush1.bf16.msra.mxu0 0
    %668 = vmatprep.subr.bf16.mxu0 0
    %669 = vmatpush1.bf16.msra.mxu0 0
    %670 = vmatprep.subr.bf16.mxu0 0
    %671 = vmatpush1.bf16.msra.mxu0 0
    %672 = vmatprep.subr.bf16.mxu0 0
    %673 = vmatpush1.bf16.msra.mxu0 0
    %674 = vmatprep.subr.bf16.mxu0 0
    %675 = vmatpush1.bf16.msra.mxu0 0
    %676 = vmatprep.subr.bf16.mxu0 0
    %677 = vmatpush1.bf16.msra.mxu0 0
    %678 = vmatprep.subr.bf16.mxu0 0
    %679 = vmatpush1.bf16.msra.mxu0 0
    %680 = vmatprep.mubr.bf16.mxu0 0
    %681 = vmatmul.mubr.bf16.gmra.mrb[0].mxu0 %v526
    %v682 = vpop.f32.mrb[0].mxu0
    %v683 = vadd.f32 %v643, %v682
    %v684 = vpop.f32.mrb[0].mxu0
    %v685 = vpop.f32.mrb[0].mxu0
    %v686 = vpop.f32.mrb[0].mxu0
    %687 = vdwg.mxu0
    %688 = vst [vmem:[#allocation7] sm:$0xff] %v683
    // Predicated region
    $region22: #{tpu_custom_call.1} parent=1 // pred_check
      _
    $region23: #{tpu_custom_call.1} parent=1 // pred_check_branch
      %690 = sbr.rel (0) target = $region25
    $region24: #{tpu_custom_call.1} parent=1 // pred_region
      %s692 = ssub.s32 128, 32
      %693 = vsyncadd [#allocation4], %s692
      %s694 = sshll.u32 [#allocation7], 4
      %s695 = int_to_ptr.vmem [resolvable:$true] %s694
      %700 = dma.vmem_to_hbm [thread:$0]  %s695, 32, %s3, [#allocation4], 32, 32, 2
    $region25: #{tpu_custom_call.1} parent=1 // pred_fallthru
      _
    // Predicated region
    $region26: #{tpu_custom_call.1} parent=1 // pred_check
      _
    $region27: #{tpu_custom_call.1} parent=1 // pred_check_branch
      %702 = sbr.rel (0) target = $region29
    $region28: #{tpu_custom_call.1} parent=1 // pred_region
      %703 = dma.done [#allocation4], 128
    $region29: #{tpu_custom_call.1} parent=1 // pred_fallthru
      _
    %704 = vsyncpa [#allocation3], 1
    %705 = vsyncpa [#allocation6], 1
    %706 = vsyncpa [#allocation4], 1

</llo_original>
